<compile_context>
chip_gen: v7x
topology: tpu7x:2x2x1
jax: 0.10.0
libtpu: 0.0.40
codegen_flags: <defaults>
</compile_context>

<pallas_src>
import jax
import jax.numpy as jnp
import numpy as np
from jax.experimental import pallas as pl
from jax.experimental.pallas import tpu as pltpu


# ---------------------------------------------------------------------------
# helpers
# ---------------------------------------------------------------------------
def _cdiv(a, b):
    return -(-a // b)


def _round_up(a, b):
    return _cdiv(a, b) * b


_VMEM_LIMIT = 32 * 1024 * 1024   # explicit scoped-VMEM budget (safe on v5e/v6e/v7x)
_CONV_M_TILE_MAX = 4096          # max lane-side (spatial) tile of the conv GEMM
_MLP_K_TILE = 256                # reduction tile of the MLP GEMMs
_NORM_BLOCK_BYTES = 4 * 1024 * 1024
_EPS = 1e-5


# ---------------------------------------------------------------------------
# Pallas kernel bodies
# ---------------------------------------------------------------------------
def _convt_gemm_kernel(a_ref, b_ref, o_ref):
    # a: (1, Co_pad, K) bf16   b: (1, K, MT) bf16   o: (1, Co_pad, MT)
    o_ref[0] = jnp.dot(a_ref[0], b_ref[0],
                       preferred_element_type=jnp.float32).astype(o_ref.dtype)


def _convt_gemm_bias_kernel(a_ref, b_ref, bias_ref, o_ref):
    acc = jnp.dot(a_ref[0], b_ref[0], preferred_element_type=jnp.float32)
    o_ref[0] = (acc + bias_ref[0]).astype(o_ref.dtype)     # bias blk: (1, Co_pad, 1)


def _instance_norm_relu_kernel(x_ref, o_ref):
    # x: (rows, L), L == exact H*W of one (g, n, c) instance -> exact statistics.
    x = x_ref[...].astype(jnp.float32)
    inv_n = 1.0 / x.shape[-1]
    mean = jnp.sum(x, axis=-1, keepdims=True) * inv_n
    xc = x - mean
    var = jnp.sum(xc * xc, axis=-1, keepdims=True) * inv_n      # biased, as torch
    y = xc * jax.lax.rsqrt(var + _EPS)
    o_ref[...] = jnp.maximum(y, 0.0).astype(o_ref.dtype)


def _linear_ln_lrelu_kernel(x_ref, w_ref, b_ref, g_ref, bt_ref, o_ref, acc_ref):
    k = pl.program_id(0)

    @pl.when(k == 0)
    def _init():
        acc_ref[...] = jnp.zeros_like(acc_ref)

    acc_ref[...] += jnp.dot(x_ref[...], w_ref[...],
                            preferred_element_type=jnp.float32)

    @pl.when(k == pl.num_programs(0) - 1)
    def _fin():
        y = acc_ref[...] + b_ref[...]
        inv_n = 1.0 / y.shape[-1]
        mean = jnp.sum(y, axis=-1, keepdims=True) * inv_n
        yc = y - mean
        var = jnp.sum(yc * yc, axis=-1, keepdims=True) * inv_n
        y = yc * jax.lax.rsqrt(var + _EPS)
        y = y * g_ref[...] + bt_ref[...]
        y = jnp.where(y > 0, y, 0.01 * y)     # LeakyReLU(0.01); Dropout == identity
        o_ref[...] = y.astype(o_ref.dtype)


def _linear_bias_kernel(x_ref, w_ref, b_ref, o_ref, acc_ref):
    k = pl.program_id(0)

    @pl.when(k == 0)
    def _init():
        acc_ref[...] = jnp.zeros_like(acc_ref)

    acc_ref[...] += jnp.dot(x_ref[...], w_ref[...],
                            preferred_element_type=jnp.float32)

    @pl.when(k == pl.num_programs(0) - 1)
    def _fin():
        o_ref[...] = (acc_ref[...] + b_ref[...]).astype(o_ref.dtype)


# ---------------------------------------------------------------------------
# ConvTranspose2d: stride-phase decomposition
# out[n,co,oh,ow] = sum x[n,ci,ih,iw]*w[ci,co,kh,kw], oh=ih*sH-pH+kh, ow=iw*sW-pW+kw
# For output phase (rh=oh%sH, rw=ow%sW) only taps kh=(rh+pH)%sH + j*sH contribute,
# at ih = ho + (rh+pH)//sH - j  (oh = ho*sH + rh).  Same for W.
# ---------------------------------------------------------------------------
def _phase_taps(cfg):
    kH, kW = cfg["kernel"]
    sH, sW = cfg["stride"]
    pH, pW = cfg["padding"]
    JH, JW = _cdiv(kH, sH), _cdiv(kW, sW)
    KH0 = [(rh + pH) % sH for rh in range(sH)]
    DH = [(rh + pH) // sH for rh in range(sH)]
    NJH = [max(0, _cdiv(kH - KH0[rh], sH)) for rh in range(sH)]
    KW0 = [(rw + pW) % sW for rw in range(sW)]
    DW = [(rw + pW) // sW for rw in range(sW)]
    NJW = [max(0, _cdiv(kW - KW0[rw], sW)) for rw in range(sW)]
    return JH, JW, KH0, DH, NJH, KW0, DW, NJW


def _phase_geometry(H, W, cfg):
    kH, kW = cfg["kernel"]
    sH, sW = cfg["stride"]
    pH, pW = cfg["padding"]
    JH, JW, _, DH, NJH, _, DW, NJW = _phase_taps(cfg)
    Ho = (H - 1) * sH - 2 * pH + kH
    Wo = (W - 1) * sW - 2 * pW + kW
    Hos, Wos = _cdiv(Ho, sH), _cdiv(Wo, sW)
    Lh = max([0] + [NJH[rh] - 1 - DH[rh] for rh in range(sH)])
    Rh = max(0, max(DH) + Hos - H)
    Lw = max([0] + [NJW[rw] - 1 - DW[rw] for rw in range(sW)])
    Rw = max(0, max(DW) + Wos - W)
    return dict(Ho=Ho, Wo=Wo, Hos=Hos, Wos=Wos, JH=JH, JW=JW,
                DH=DH, NJH=NJH, DW=DW, NJW=NJW, Lh=Lh, Rh=Rh, Lw=Lw, Rw=Rw)


def _pack_convt_weight(w, cfg):
    """(Ci, Co, kH, kW) torch ConvTranspose2d weight ->
       (P=sH*sW, Co_pad, K=JH*JW*Ci) bf16 per-phase GEMM weights, K tap-major."""
    Ci, Co, kH, kW = w.shape
    sH, sW = cfg["stride"]
    JH, JW, KH0, _, NJH, KW0, _, NJW = _phase_taps(cfg)
    zero = jnp.zeros((Ci, Co), w.dtype)
    blocks = []
    for rh in range(sH):
        for rw in range(sW):
            taps = []
            for j in range(JH):
                kh_i = KH0[rh] + j * sH
                for t in range(JW):
                    kw_i = KW0[rw] + t * sW
                    if j < NJH[rh] and t < NJW[rw]:
                        taps.append(w[:, :, kh_i, kw_i])        # (Ci, Co)
                    else:
                        taps.append(zero)                        # padded tap
            blk = jnp.stack(taps, axis=0)                        # (T, Ci, Co)
            blocks.append(blk.reshape(JH * JW * Ci, Co).T)       # (Co, K), k = tap*Ci+ci
    wp = jnp.stack(blocks, axis=0)                               # (P, Co, K)
    co_pad = _round_up(Co, 8)                                    # sublane, not 128
    if co_pad != Co:
        wp = jnp.pad(wp, ((0, 0), (0, co_pad - Co), (0, 0)))
    return wp.astype(jnp.bfloat16)


def _build_patches(x, cfg):
    """Phase-decomposed im2col (no inserted zeros, single materialization).
       x: (G, N, Ci, H, W) -> (G*P, K, M) bf16,  k = tap*Ci + ci, m = (n,ho,wo)."""
    G, N, Ci, H, W = x.shape
    sH, sW = cfg["stride"]
    g = _phase_geometry(H, W, cfg)
    JH, JW, Hos, Wos = g["JH"], g["JW"], g["Hos"], g["Wos"]
    T = JH * JW
    P = sH * sW
    # small transpose of the input so each window is (G, Ci, N, Hos, Wos)
    xt = x.astype(jnp.bfloat16).transpose(0, 2, 1, 3, 4)          # (G, Ci, N, H, W)
    xp = jnp.pad(xt, ((0, 0), (0, 0), (0, 0),
                      (g["Lh"], g["Rh"]), (g["Lw"], g["Rw"])))
    zero_win = jnp.zeros((G, Ci, N, Hos, Wos), jnp.bfloat16)
    windows = []
    for rh in range(sH):
        for rw in range(sW):
            for j in range(JH):
                for t in range(JW):
                    if j < g["NJH"][rh] and t < g["NJW"][rw]:
                        ah = g["DH"][rh] - j + g["Lh"]
                        aw = g["DW"][rw] - t + g["Lw"]
                        win = jax.lax.slice(
                            xp, (0, 0, 0, ah, aw),
                            (G, Ci, N, ah + Hos, aw + Wos))
                    else:
                        win = zero_win                            # tap multiplied by 0 weight
                    windows.append(win)
    pat = jnp.stack(windows, axis=1)              # (G, P*T, Ci, N, Hos, Wos) -- one copy
    M = N * Hos * Wos
    return pat.reshape(G * P, T * Ci, M)          # free reshape (row-major), no transpose


def conv_transpose2d(x, w_packed, bias, cfg):
    """x: (G, N, Ci, H, W); w_packed: (G*P, Co_pad, K) bf16;
       bias: (G*P, Co_pad, 1) f32 | None.  Returns (G, N, Co, Ho, Wo)."""
    G, N, Ci, H, W = x.shape
    sH, sW = cfg["stride"]
    Co = cfg["cout"]
    g = _phase_geometry(H, W, cfg)
    Hos, Wos = g["Hos"], g["Wos"]
    P = sH * sW
    K = Ci * g["JH"] * g["JW"]
    co_pad = w_packed.shape[1]
    assert w_packed.shape == (G * P, co_pad, K)

    pat = _build_patches(x, cfg)                              # (G*P, K, M)
    M = N * Hos * Wos
    MT = min(_CONV_M_TILE_MAX, _round_up(M, 128))             # lane tile, multiple of 128
    Mp = _round_up(M, MT)
    if Mp != M:
        pat = jnp.pad(pat, ((0, 0), (0, 0), (0, Mp - M)))

    out_dtype = jnp.bfloat16 if bias is None else jnp.float32
    in_specs = [pl.BlockSpec((1, co_pad, K), lambda p, m: (p, 0, 0)),
                pl.BlockSpec((1, K, MT), lambda p, m: (p, 0, m))]
    operands = [w_packed, pat]
    kernel = _convt_gemm_kernel
    if bias is not None:
        in_specs.append(pl.BlockSpec((1, co_pad, 1), lambda p, m: (p, 0, 0)))
        operands.append(bias)
        kernel = _convt_gemm_bias_kernel

    y = pl.pallas_call(
        kernel,
        out_shape=jax.ShapeDtypeStruct((G * P, co_pad, Mp), out_dtype),
        grid_spec=pltpu.PrefetchScalarGridSpec(
            num_scalar_prefetch=0,
            grid=(G * P, Mp // MT),                 # single K block -> no k axis
            in_specs=in_specs,
            out_specs=pl.BlockSpec((1, co_pad, MT), lambda p, m: (p, 0, m)),
        ),
        compiler_params=pltpu.CompilerParams(
            dimension_semantics=("parallel", "parallel"),
            vmem_limit_bytes=_VMEM_LIMIT),
    )(*operands)

    # interleave the output phases back into NCHW and crop the phase padding
    y = y[:, :Co, :M].reshape(G, sH, sW, Co, N, Hos, Wos)
    y = y.transpose(0, 4, 3, 5, 1, 6, 2).reshape(G, N, Co, Hos * sH, Wos * sW)
    return y[:, :, :, :g["Ho"], :g["Wo"]]


# ---------------------------------------------------------------------------
# InstanceNorm2d(affine=False, eps=1e-5) + ReLU  (row-tiled Pallas kernel)
# ---------------------------------------------------------------------------
def instance_norm_relu(x):
    lead = x.shape[:-2]
    H, W = x.shape[-2:]
    R = int(np.prod(lead))
    L = H * W
    assert R % 8 == 0
    rows = R                                        # largest row block under budget
    while rows * L * 2 > _NORM_BLOCK_BYTES and rows % 16 == 0:
        rows //= 2
    x2 = x.reshape(R, L)
    y = pl.pallas_call(
        _instance_norm_relu_kernel,
        out_shape=jax.ShapeDtypeStruct((R, L), x.dtype),
        grid_spec=pltpu.PrefetchScalarGridSpec(
            num_scalar_prefetch=0,
            grid=(R // rows,),
            in_specs=[pl.BlockSpec((rows, L), lambda i: (i, 0))],
            out_specs=pl.BlockSpec((rows, L), lambda i: (i, 0)),
        ),
        compiler_params=pltpu.CompilerParams(
            dimension_semantics=("parallel",),
            vmem_limit_bytes=_VMEM_LIMIT),
    )(x2)
    return y.reshape(x.shape)


# ---------------------------------------------------------------------------
# MLP: fused Linear(+bias)(+LayerNorm+LeakyReLU) Pallas kernel
# ---------------------------------------------------------------------------
def mlp_layer(h, lp, final):
    MB, Kp = h.shape
    Nout = lp["w"].shape[1]
    assert lp["w"].shape[0] == Kp and Kp % _MLP_K_TILE == 0 and MB % 8 == 0
    in_specs = [pl.BlockSpec((MB, _MLP_K_TILE), lambda k: (0, k)),
                pl.BlockSpec((_MLP_K_TILE, Nout), lambda k: (k, 0)),
                pl.BlockSpec((1, Nout), lambda k: (0, 0))]
    operands = [h, lp["w"], lp["b"]]
    if final:
        kernel = _linear_bias_kernel
    else:
        kernel = _linear_ln_lrelu_kernel
        in_specs += [pl.BlockSpec((1, Nout), lambda k: (0, 0)),
                     pl.BlockSpec((1, Nout), lambda k: (0, 0))]
        operands += [lp["g"], lp["beta"]]
    return pl.pallas_call(
        kernel,
        out_shape=jax.ShapeDtypeStruct((MB, Nout), jnp.bfloat16),
        grid_spec=pltpu.PrefetchScalarGridSpec(
            num_scalar_prefetch=0,
            grid=(Kp // _MLP_K_TILE,),
            in_specs=in_specs,
            out_specs=pl.BlockSpec((MB, Nout), lambda k: (0, 0)),
            scratch_shapes=[pltpu.VMEM((MB, Nout), jnp.float32)],
        ),
        compiler_params=pltpu.CompilerParams(
            dimension_semantics=("arbitrary",),
            vmem_limit_bytes=_VMEM_LIMIT),
    )(*operands)


def mlp_forward(x, mlp_params):
    B = x.shape[0]
    MB = _round_up(B, 8)
    h = jnp.pad(x.astype(jnp.bfloat16), ((0, MB - B), (0, 0)))
    n = len(mlp_params)
    for i, lp in enumerate(mlp_params):
        Kp = lp["w"].shape[0]
        if h.shape[1] < Kp:                        # zero-pad K to the tile multiple
            h = jnp.pad(h, ((0, 0), (0, Kp - h.shape[1])))
        h = mlp_layer(h, lp, final=(i == n - 1))
    return h[:B]


# ---------------------------------------------------------------------------
# Model: specs, params, forward
# ---------------------------------------------------------------------------
def deconv_specs(init_kernels, spec_len):
    return [
        dict(cin=init_kernels, cout=64, kernel=(3, 3), stride=(3, 2), padding=(2, 2), norm=True),
        dict(cin=64, cout=32, kernel=(5, 5), stride=(3, 2), padding=(3, 2), norm=True),
        dict(cin=32, cout=16, kernel=(7, 7), stride=(4, 2), padding=(3, 2), norm=True),
        dict(cin=16, cout=8, kernel=(7, spec_len - 54), stride=(4, 1), padding=(3, 2), norm=True),
        dict(cin=8, cout=1, kernel=(3, 3), stride=(1, 1), padding=(1, 1), norm=False),
    ]


def _init_deconv_params(key, specs, n_branches=2):
    """Both branches (abs, angle) stacked into one weight set per layer:
       w: (G*P, Co_pad, K) ; b: (G*P, Co_pad, 1) for the final (un-normed) layer."""
    layers = []
    for cfg in specs:
        ci, co = cfg["cin"], cfg["cout"]
        kh, kw = cfg["kernel"]
        P = cfg["stride"][0] * cfg["stride"][1]
        co_pad = _round_up(co, 8)
        bound = 1.0 / np.sqrt(ci * kh * kw)
        ws, bs = [], []
        for _ in range(n_branches):
            key, kw_, kb_ = jax.random.split(key, 3)
            w = jax.random.uniform(kw_, (ci, co, kh, kw), jnp.float32, -bound, bound)
            b = jax.random.uniform(kb_, (co,), jnp.float32, -bound, bound)
            ws.append(_pack_convt_weight(w, cfg))                         # (P, Co_pad, K)
            bp = jnp.pad(b, (0, co_pad - co)).reshape(1, co_pad, 1)
            bs.append(jnp.tile(bp, (P, 1, 1)))                            # (P, Co_pad, 1)
        entry = {"w": jnp.concatenate(ws, axis=0)}                        # (G*P, Co_pad, K)
        if not cfg["norm"]:
            entry["b"] = jnp.concatenate(bs, axis=0)                      # (G*P, Co_pad, 1)
        # Per-channel bias of the norm layers is dropped: InstanceNorm2d
        # (affine=False) subtracts the per-channel mean, cancelling it exactly.
        layers.append(entry)
    return layers, key


def init_params(key, input_dim, hidden_dims, spec_len, init_kernels):
    dims = [input_dim] + list(hidden_dims) + [init_kernels * 9 * 9]
    mlp = []
    for i in range(len(dims) - 1):
        din, dout = dims[i], dims[i + 1]
        key, kw_, kb_ = jax.random.split(key, 3)
        bound = 1.0 / np.sqrt(din)
        w = jax.random.uniform(kw_, (din, dout), jnp.float32, -bound, bound)
        b = jax.random.uniform(kb_, (dout,), jnp.float32, -bound, bound)
        kp = _round_up(din, _MLP_K_TILE)
        lp = {"w": jnp.pad(w, ((0, kp - din), (0, 0))).astype(jnp.bfloat16),
              "b": b.reshape(1, dout)}
        if i < len(dims) - 2:                      # hidden layers have LayerNorm
            lp["g"] = jnp.ones((1, dout), jnp.float32)
            lp["beta"] = jnp.zeros((1, dout), jnp.float32)
        mlp.append(lp)
    specs = deconv_specs(init_kernels, spec_len)
    deconv, key = _init_deconv_params(key, specs, n_branches=2)
    return {"mlp": mlp, "deconv": deconv}, specs


def deconv_forward(x_branches, layers, specs):
    h = x_branches                                         # (G, N, C, H, W)
    for cfg, p in zip(specs, layers):
        h = conv_transpose2d(h, p["w"], p.get("b"), cfg)
        if cfg["norm"]:
            h = instance_norm_relu(h)
    return h


def spectrogram_forward(x, params, specs, init_kernels):
    B = x.shape[0]
    h = mlp_forward(x, params["mlp"])                      # (B, init_kernels*81)
    h = h.reshape(B, init_kernels, 9, 9)
    hb = jnp.stack([h, h], axis=0)                         # branch axis G=2 (abs, angle)
    y = deconv_forward(hb, params["deconv"], specs)        # (2, B, 1, Ho, Wo)
    return y[:, :, 0].transpose(1, 0, 2, 3).astype(jnp.float32)   # (B, 2, Ho, Wo)


# ---------------------------------------------------------------------------
# Self-tests against plain-JAX references (loose tolerance: bf16 GEMM inputs)
# ---------------------------------------------------------------------------
def _convt_reference(x, w, b, stride, padding):
    N, Ci, H, W = x.shape
    _, Co, kH, kW = w.shape
    sH, sW = stride
    pH, pW = padding
    Ho = (H - 1) * sH - 2 * pH + kH
    Wo = (W - 1) * sW - 2 * pW + kW
    t = jnp.einsum("nchw,cokl->noklhw", x, w)
    y = jnp.zeros((N, Co, Ho + 2 * pH, Wo + 2 * pW), jnp.float32)
    for kh in range(kH):
        for kw in range(kW):
            y = y.at[:, :, kh:kh + (H - 1) * sH + 1:sH,
                     kw:kw + (W - 1) * sW + 1:sW].add(t[:, :, kh, kw])
    y = y[:, :, pH:pH + Ho, pW:pW + Wo]
    return y + b.reshape(1, Co, 1, 1)


def _self_test():
    key = jax.random.PRNGKey(7)

    # --- single-group conv-transpose + bias, several geometries ---
    cases = [
        dict(cin=8, cout=8, kernel=(5, 5), stride=(3, 2), padding=(3, 2), norm=False),
        dict(cin=8, cout=4, kernel=(7, 3), stride=(4, 2), padding=(3, 2), norm=False),
        dict(cin=8, cout=8, kernel=(3, 3), stride=(1, 1), padding=(1, 1), norm=False),
    ]
    for cfg in cases:
        key, k1, k2, k3 = jax.random.split(key, 4)
        x = jax.random.normal(k1, (2, cfg["cin"], 7, 6), jnp.float32)
        w = jax.random.normal(k2, (cfg["cin"], cfg["cout"]) + cfg["kernel"],
                              jnp.float32) * 0.1
        b = jax.random.normal(k3, (cfg["cout"],), jnp.float32) * 0.1
        P = cfg["stride"][0] * cfg["stride"][1]
        co_pad = _round_up(cfg["cout"], 8)
        bias = jnp.tile(jnp.pad(b, (0, co_pad - cfg["cout"])).reshape(1, co_pad, 1),
                        (P, 1, 1))
        got = conv_transpose2d(x[None], _pack_convt_weight(w, cfg), bias, cfg)[0]
        ref = _convt_reference(x, w, b, cfg["stride"], cfg["padding"])
        np.testing.assert_allclose(np.asarray(got, np.float32),
                                   np.asarray(ref, np.float32),
                                   rtol=3e-2, atol=3e-2)

    # --- dual-branch (G=2) conv-transpose, no bias (norm layer path) ---
    cfgd = dict(cin=8, cout=8, kernel=(5, 5), stride=(3, 2), padding=(3, 2), norm=True)
    key, k1, k2, k3 = jax.random.split(key, 4)
    x = jax.random.normal(k1, (2, cfgd["cin"], 7, 6), jnp.float32)
    w0 = jax.random.normal(k2, (cfgd["cin"], cfgd["cout"]) + cfgd["kernel"], jnp.float32) * 0.1
    w1 = jax.random.normal(k3, (cfgd["cin"], cfgd["cout"]) + cfgd["kernel"], jnp.float32) * 0.1
    wp = jnp.concatenate([_pack_convt_weight(w0, cfgd),
                          _pack_convt_weight(w1, cfgd)], axis=0)
    got = conv_transpose2d(jnp.stack([x, x], axis=0), wp, None, cfgd)
    zb = jnp.zeros((cfgd["cout"],), jnp.float32)
    for gi, wref in enumerate((w0, w1)):
        ref = _convt_reference(x, wref, zb, cfgd["stride"], cfgd["padding"])
        np.testing.assert_allclose(np.asarray(got[gi], np.float32),
                                   np.asarray(ref, np.float32),
                                   rtol=4e-2, atol=4e-2)

    # --- InstanceNorm + ReLU ---
    key, k1 = jax.random.split(key)
    xin = jax.random.normal(k1, (2, 8, 5, 7), jnp.float32).astype(jnp.bfloat16)
    got = instance_norm_relu(xin).astype(jnp.float32)
    xf = xin.astype(jnp.float32)
    mu = xf.mean(axis=(2, 3), keepdims=True)
    va = xf.var(axis=(2, 3), keepdims=True)
    ref = jnp.maximum((xf - mu) * jax.lax.rsqrt(va + _EPS), 0.0)
    np.testing.assert_allclose(np.asarray(got), np.asarray(ref), rtol=3e-2, atol=3e-2)

    # --- fused Linear + LayerNorm + LeakyReLU ---
    key, k1, k2, k3 = jax.random.split(key, 4)
    din, dout, b_sz = 512, 384, 2
    x = jax.random.normal(k1, (b_sz, din), jnp.float32)
    w = jax.random.normal(k2, (din, dout), jnp.float32) * 0.05
    bb = jax.random.normal(k3, (dout,), jnp.float32) * 0.1
    gam = 1.3 * jnp.ones((1, dout), jnp.float32)
    bet = 0.2 * jnp.ones((1, dout), jnp.float32)
    lp = {"w": w.astype(jnp.bfloat16), "b": bb.reshape(1, dout), "g": gam, "beta": bet}
    hp = jnp.pad(x.astype(jnp.bfloat16), ((0, 8 - b_sz), (0, 0)))
    got = mlp_layer(hp, lp, final=False)[:b_sz].astype(jnp.float32)
    y = x @ w + bb
    mu = y.mean(axis=-1, keepdims=True)
    va = y.var(axis=-1, keepdims=True)
    yn = (y - mu) * jax.lax.rsqrt(va + _EPS) * gam + bet
    ref = jnp.where(yn > 0, yn, 0.01 * yn)
    np.testing.assert_allclose(np.asarray(got), np.asarray(ref), rtol=3e-2, atol=3e-2)


# ---------------------------------------------------------------------------
if __name__ == "__main__":
    _self_test()

    B, INPUT_DIM, SPEC_LEN, INIT_KERNELS = 2, 2048, 64, 128
    HIDDEN_DIMS = (648, 1296, 2592, 5184)

    key = jax.random.PRNGKey(0)
    kx, kp = jax.random.split(key)
    x = jax.random.normal(kx, (B, INPUT_DIM), dtype=jnp.float32)
    params, specs = init_params(kp, INPUT_DIM, HIDDEN_DIMS, SPEC_LEN, INIT_KERNELS)

    fwd = jax.jit(lambda xx, pp: spectrogram_forward(xx, pp, specs, INIT_KERNELS))
    out = fwd(x, params)                       # -> (2, 2, 1025, 64)
    jax.block_until_ready(out)

    assert out.shape == (B, 2, 1025, SPEC_LEN), out.shape
    assert out.dtype == jnp.float32
    assert bool(jnp.all(jnp.isfinite(out)))
    print("KERNEL_OK")
</pallas_src>

<mosaic_0001>
module attributes {stable_mosaic.version = 11 : i64} {
  func.func @_convt_gemm_bias_kernel(%arg0: i32, %arg1: i32, %arg2: memref<1x8x48xbf16, #tpu.memory_space<vmem>>, %arg3: memref<1x48x128xbf16, #tpu.memory_space<vmem>>, %arg4: memref<1x8x1xf32, #tpu.memory_space<vmem>>, %arg5: memref<1x8x128xf32, #tpu.memory_space<vmem>>) attributes {dimension_semantics = [#tpu.dimension_semantics<parallel>, #tpu.dimension_semantics<parallel>], iteration_bounds = array<i64: 6, 1>, scalar_prefetch = 0 : i64, scratch_operands = 0 : i64, tpu.core_type = #tpu.core_type<tc>, window_params = [{transform_indices = @transform_0, window_bounds = array<i64: 1, 8, 48>}, {transform_indices = @transform_1, window_bounds = array<i64: 1, 48, 128>}, {transform_indices = @transform_2, window_bounds = array<i64: 1, 8, 1>}, {transform_indices = @transform_3, window_bounds = array<i64: 1, 8, 128>}]} {
    %c0 = arith.constant 0 : index
    %c0_0 = arith.constant 0 : index
    %c0_1 = arith.constant 0 : index
    %0 = vector.load %arg2[%c0, %c0_0, %c0_1] : memref<1x8x48xbf16, #tpu.memory_space<vmem>>, vector<1x8x48xbf16>
    %1 = vector.shape_cast %0 : vector<1x8x48xbf16> to vector<8x48xbf16>
    %c0_2 = arith.constant 0 : index
    %c0_3 = arith.constant 0 : index
    %c0_4 = arith.constant 0 : index
    %2 = vector.load %arg3[%c0_2, %c0_3, %c0_4] : memref<1x48x128xbf16, #tpu.memory_space<vmem>>, vector<1x48x128xbf16>
    %3 = vector.shape_cast %2 : vector<1x48x128xbf16> to vector<48x128xbf16>
    %cst = arith.constant dense<0.000000e+00> : vector<8x128xf32>
    %4 = tpu.matmul %1, %3, %cst {dimension_numbers = #tpu.dot_dimension_numbers<[1], [0], [0], [1], [0, 0, 1, 1], [], []>} : vector<8x48xbf16>, vector<48x128xbf16>, vector<8x128xf32> -> vector<8x128xf32>
    %c0_5 = arith.constant 0 : index
    %c0_6 = arith.constant 0 : index
    %c0_7 = arith.constant 0 : index
    %5 = vector.load %arg4[%c0_5, %c0_6, %c0_7] : memref<1x8x1xf32, #tpu.memory_space<vmem>>, vector<1x8x1xf32>
    %6 = vector.shape_cast %5 : vector<1x8x1xf32> to vector<8x1xf32>
    %7 = vector.broadcast %6 : vector<8x1xf32> to vector<8x128xf32>
    %8 = arith.addf %4, %7 : vector<8x128xf32>
    %c0_8 = arith.constant 0 : index
    %c0_9 = arith.constant 0 : index
    %c0_10 = arith.constant 0 : index
    %9 = vector.load %arg5[%c0_8, %c0_9, %c0_10] : memref<1x8x128xf32, #tpu.memory_space<vmem>>, vector<1x8x128xf32>
    %10 = vector.shape_cast %9 : vector<1x8x128xf32> to vector<8x128xf32>
    %11 = vector.shape_cast %8 : vector<8x128xf32> to vector<1x8x128xf32>
    tpu.vector_store %arg5[%c0_8, %c0_9, %c0_10], %11 {strides = array<i32>} : memref<1x8x128xf32, #tpu.memory_space<vmem>>, vector<1x8x128xf32>,
    return
  }
  func.func @transform_0(%arg0: i32, %arg1: i32) -> (i32, i32, i32) {
    %c0_i32 = arith.constant 0 : i32
    %c0_i32_0 = arith.constant 0 : i32
    %c0_i32_1 = arith.constant 0 : i32
    return %arg0, %c0_i32, %c0_i32_0 : i32, i32, i32
  }
  func.func @transform_1(%arg0: i32, %arg1: i32) -> (i32, i32, i32) {
    %c0_i32 = arith.constant 0 : i32
    %c0_i32_0 = arith.constant 0 : i32
    return %arg0, %c0_i32, %arg1 : i32, i32, i32
  }
  func.func @transform_2(%arg0: i32, %arg1: i32) -> (i32, i32, i32) {
    %c0_i32 = arith.constant 0 : i32
    %c0_i32_0 = arith.constant 0 : i32
    %c0_i32_1 = arith.constant 0 : i32
    return %arg0, %c0_i32, %c0_i32_0 : i32, i32, i32
  }
  func.func @transform_3(%arg0: i32, %arg1: i32) -> (i32, i32, i32) {
    %c0_i32 = arith.constant 0 : i32
    %c0_i32_0 = arith.constant 0 : i32
    return %arg0, %c0_i32, %arg1 : i32, i32, i32
  }
}

</mosaic_0001>

<llo_original>
// kernel: tpu_custom_call.1
$region0: #{tpu_custom_call.1}
  #allocation0 [shape = 'u32[]', space=smem, size = 0x4, offset = 0x4, fixed_abs, tag = 'smem constant byte address 0x4 - core index']
  #allocation1 [shape = 'u32[144,128]{1,0:T(1,128)}', space=vmem, size = 0x12000, scoped, tag = 'internal scratch']
  %s0 = inlined_call_operand.vmem [shape: bf16[6,8,48], index: 0, kind: input, shape index: {}]
  %s1 = inlined_call_operand.hbm [shape: bf16[6,48,128], index: 1, kind: input, shape index: {}]
  %s2 = inlined_call_operand.vmem [shape: f32[6,8,1], index: 2, kind: input, shape index: {}]
  %s3 = inlined_call_operand.hbm [shape: f32[6,8,128], index: 3, kind: output, shape index: {}]
  %s4 = sld [smem:[#allocation0]]
  $region49: #{tpu_custom_call.1} parent=0
    _
  %s6 = ssub.s32 1, %s4
  %s7 = scalar_select 0, %s6, %s4
  $region1: #{tpu_custom_call.1} parent=0
    #allocation2 [shape = 'u8[24576]{0}', space=vmem, size = 0x6000, scoped, tag = 'input window, operand 1']
    #allocation3 [shape = 's32[2]{0}', space=sflag, size = 0x8, scoped, tag = 'scoped memory for tpu_custom_call.1']
    #allocation4 [shape = 's32[2]{0}', space=sflag, size = 0x8, scoped, tag = 'scoped memory for tpu_custom_call.1']
    #allocation5 [shape = 'u8[8192]{0}', space=vmem, size = 0x2000, scoped, tag = 'output window, operand 0']
    %8 = vsyncpa [#allocation3], 0
    %s9 = scalar_lea.sflag [#allocation3], 1
    %10 = vsyncpa %s9, 0
    %11 = vsyncpa [#allocation4], 0
    %s12 = scalar_lea.sflag [#allocation4], 1
    %13 = vsyncpa %s12, 0
    loop: start=0, step=1, limit=8
    $region2: #{tpu_custom_call.1} parent=1 // loop_pre_header
      _
    $region3: #{tpu_custom_call.1} parent=1 // loop_header
      %s15 = sphi 0, %s19
      %p16 = scmp.ge.s32.totalorder %s15, 8
      %s22 = sphi 0, %s34
      %s23 = sphi 0, %s30
      %s24 = sphi 0, %s22
      %s25 = sphi 0, %s23
      %s26 = sphi 0, %s24
      %s27 = sphi 0, %s25
      %s37 = sphi 0, %s39
      %s40 = sphi 0, %s37
      %s41 = sphi 0, %s40
      %s57 = sphi 0, %s41
      %s65 = sphi 0, %s67
      %s68 = sphi 0, %s65
      %s69 = sphi 0, %s68
      %s85 = sphi 0, %s69
      %s91 = sphi 0, %s93
      %s94 = sphi 0, %s91
      %s95 = sphi 0, %s94
      %s111 = sphi 0, %s95
      %s119 = sphi 0, %s121
      %s122 = sphi 0, %s119
      %s123 = sphi 0, %s122
      %s139 = sphi 0, %s123
    $region4: #{tpu_custom_call.1} parent=1 // loop_header_branch
      %18 = sbr.rel (%p16) target = $region8
    $region5: #{tpu_custom_call.1} parent=1 // loop_body
      %s20 = ssub.s32 %s15, 1
      %s21 = ssub.s32 %s15, 2
      %s28 = sadd.s32 1, %s23
      %p29 = scmp.ge.s32.totalorder %s28, 1
      %s30 = scalar_select %p29, 0, %s28
      %s31 = sadd.s32 1, %s22
      %s32 = scalar_select %p29, %s31, %s22
      %p33 = scmp.ge.s32.totalorder %s32, 6
      %s34 = scalar_select %p33, 0, %s32
      %s35 = ssub.s32 %s22, %s34
      %p36 = scmp.eq.s32.totalorder %s35, 0
      %s38 = sadd.s32 %s37, 1
      %s39 = scalar_select %p36, %s37, %s38
      %p42 = pneg %p36
      %p43 = scmp.eq.s32.totalorder %s15, 5
      %p44 = por %p42, %p43
      %p45 = scmp.ne.s32.totalorder %s37, %s40
      %p46 = scmp.eq.s32.totalorder %s15, 0
      %p47 = por %p45, %p46
      %p48 = scmp.ne.s32.totalorder %s37, %s40
      %p49 = scmp.eq.s32.totalorder %s20, 5
      %p50 = por %p48, %p49
      %p51 = scmp.ne.s32.totalorder %s40, %s41
      %p52 = scmp.eq.s32.totalorder %s20, 0
      %p53 = por %p51, %p52
      %p54 = scmp.ne.s32.totalorder %s40, %s41
      %p55 = scmp.eq.s32.totalorder %s21, 5
      %p56 = por %p54, %p55
      %p58 = scmp.ne.s32.totalorder %s41, %s57
      %p59 = scmp.eq.s32.totalorder %s21, 0
      %p60 = por %p58, %p59
      %s61 = ssub.s32 %s22, %s34
      %s62 = ssub.s32 %s23, %s30
      %s63 = sor.u32 %s61, %s62
      %p64 = scmp.eq.s32.totalorder %s63, 0
      %s66 = sadd.s32 %s65, 1
      %s67 = scalar_select %p64, %s65, %s66
      %p70 = pneg %p64
      %p71 = scmp.eq.s32.totalorder %s15, 5
      %p72 = por %p70, %p71
      %p73 = scmp.ne.s32.totalorder %s65, %s68
      %p74 = scmp.eq.s32.totalorder %s15, 0
      %p75 = por %p73, %p74
      %p76 = scmp.ne.s32.totalorder %s65, %s68
      %p77 = scmp.eq.s32.totalorder %s20, 5
      %p78 = por %p76, %p77
      %p79 = scmp.ne.s32.totalorder %s68, %s69
      %p80 = scmp.eq.s32.totalorder %s20, 0
      %p81 = por %p79, %p80
      %p82 = scmp.ne.s32.totalorder %s68, %s69
      %p83 = scmp.eq.s32.totalorder %s21, 5
      %p84 = por %p82, %p83
      %p86 = scmp.ne.s32.totalorder %s69, %s85
      %p87 = scmp.eq.s32.totalorder %s21, 0
      %p88 = por %p86, %p87
      %s89 = ssub.s32 %s22, %s34
      %p90 = scmp.eq.s32.totalorder %s89, 0
      %s92 = sadd.s32 %s91, 1
      %s93 = scalar_select %p90, %s91, %s92
      %p96 = pneg %p90
      %p97 = scmp.eq.s32.totalorder %s15, 5
      %p98 = por %p96, %p97
      %p99 = scmp.ne.s32.totalorder %s91, %s94
      %p100 = scmp.eq.s32.totalorder %s15, 0
      %p101 = por %p99, %p100
      %p102 = scmp.ne.s32.totalorder %s91, %s94
      %p103 = scmp.eq.s32.totalorder %s20, 5
      %p104 = por %p102, %p103
      %p105 = scmp.ne.s32.totalorder %s94, %s95
      %p106 = scmp.eq.s32.totalorder %s20, 0
      %p107 = por %p105, %p106
      %p108 = scmp.ne.s32.totalorder %s94, %s95
      %p109 = scmp.eq.s32.totalorder %s21, 5
      %p110 = por %p108, %p109
      %p112 = scmp.ne.s32.totalorder %s95, %s111
      %p113 = scmp.eq.s32.totalorder %s21, 0
      %p114 = por %p112, %p113
      %s115 = ssub.s32 %s22, %s34
      %s116 = ssub.s32 %s23, %s30
      %s117 = sor.u32 %s115, %s116
      %p118 = scmp.eq.s32.totalorder %s117, 0
      %s120 = sadd.s32 %s119, 1
      %s121 = scalar_select %p118, %s119, %s120
      %p124 = pneg %p118
      %p125 = scmp.eq.s32.totalorder %s15, 5
      %p126 = por %p124, %p125
      %p127 = scmp.ne.s32.totalorder %s119, %s122
      %p128 = scmp.eq.s32.totalorder %s15, 0
      %p129 = por %p127, %p128
      %p130 = scmp.ne.s32.totalorder %s119, %s122
      %p131 = scmp.eq.s32.totalorder %s20, 5
      %p132 = por %p130, %p131
      %p133 = scmp.ne.s32.totalorder %s122, %s123
      %p134 = scmp.eq.s32.totalorder %s20, 0
      %p135 = por %p133, %p134
      %p136 = scmp.ne.s32.totalorder %s122, %s123
      %p137 = scmp.eq.s32.totalorder %s21, 5
      %p138 = por %p136, %p137
      %p140 = scmp.ne.s32.totalorder %s123, %s139
      %p141 = scmp.eq.s32.totalorder %s21, 0
      %p142 = por %p140, %p141
      %p143 = scmp.le.s32.totalorder 1, %s15
      %p144 = scmp.lt.s32.totalorder %s15, 7
      %p145 = pnand %p143, %p144
      %p146 = pneg %p145
      // Predicated region
      $region9: #{tpu_custom_call.1} parent=5 // pred_check
        _
      $region10: #{tpu_custom_call.1} parent=5 // pred_check_branch
        %148 = sbr.rel (%p145) target = $region12
      $region11: #{tpu_custom_call.1} parent=5 // pred_region
        %s149 = ssub.s32 %s15, 1
      $region12: #{tpu_custom_call.1} parent=5 // pred_fallthru
        _
      %p150 = scmp.lt.s32.totalorder %s15, 6
      // Predicated region
      $region13: #{tpu_custom_call.1} parent=5 // pred_check
        %p151 = pneg %p150
      $region14: #{tpu_custom_call.1} parent=5 // pred_check_branch
        %153 = sbr.rel (%p151) target = $region16
      $region15: #{tpu_custom_call.1} parent=5 // pred_region
        // Predicated region
        $region17: #{tpu_custom_call.1} parent=15 // pred_check
          %p154 = pneg %p47
        $region18: #{tpu_custom_call.1} parent=15 // pred_check_branch
          %156 = sbr.rel (%p154) target = $region20
        $region19: #{tpu_custom_call.1} parent=15 // pred_region
          %p157 = scmp.lt.s32.totalorder %s22, 5
          %s158 = scalar_select %p157, %s22, 5
          %s159 = smul.addr %s158, 4
          %s160 = scalar_lea.vmem %s0, %s159
        $region20: #{tpu_custom_call.1} parent=15 // pred_fallthru
          _
        // Predicated region
        $region21: #{tpu_custom_call.1} parent=15 // pred_check
          %p161 = pneg %p75
        $region22: #{tpu_custom_call.1} parent=15 // pred_check_branch
          %163 = sbr.rel (%p161) target = $region24
        $region23: #{tpu_custom_call.1} parent=15 // pred_region
          %s164 = sand.u32 %s65, 1
          %s165 = scalar_lea.sflag [#allocation3], %s164
          %s166 = sand.u32 %s65, 1
          %s167 = smul.addr %s166, 24
          %s168 = scalar_lea.vmem [#allocation2], %s167
          %s170 = ssub.s32 384, 384
          %171 = vsyncadd %s165, %s170
          %s172 = smul.addr %s22, 6
          %s173 = sadd.s32 %s23, %s172
          %s174 = smul.addr %s173, 64
          %s175 = scalar_lea.hbm %s1, %s174
          %s176 = sshll.u32 %s168, 4
          %s177 = int_to_ptr.vmem [resolvable:$true] %s176
          %182 = dma.hbm_to_vmem [thread:$0]  %s175, 384, %s177, %s165, 64, 64, 4
        $region24: #{tpu_custom_call.1} parent=15 // pred_fallthru
          _
        // Predicated region
        $region25: #{tpu_custom_call.1} parent=15 // pred_check
          %p183 = pneg %p101
        $region26: #{tpu_custom_call.1} parent=15 // pred_check_branch
          %185 = sbr.rel (%p183) target = $region28
        $region27: #{tpu_custom_call.1} parent=15 // pred_region
          %p186 = scmp.lt.s32.totalorder %s22, 5
          %s187 = scalar_select %p186, %s22, 5
          %s188 = smul.addr %s187, 8
          %s189 = scalar_lea.vmem %s2, %s188
        $region28: #{tpu_custom_call.1} parent=15 // pred_fallthru
          _
      $region16: #{tpu_custom_call.1} parent=5 // pred_fallthru
        _
      %p190 = scmp.le.s32.totalorder 1, %s15
      %p191 = scmp.lt.s32.totalorder %s15, 7
      %p192 = pnand %p190, %p191
      %p193 = pneg %p192
      // Predicated region
      $region29: #{tpu_custom_call.1} parent=5 // pred_check
        _
      $region30: #{tpu_custom_call.1} parent=5 // pred_check_branch
        %195 = sbr.rel (%p192) target = $region32
      $region31: #{tpu_custom_call.1} parent=5 // pred_region
        %s196 = ssub.s32 %s15, 1
        %s197 = sand.u32 %s68, 1
        %s198 = scalar_lea.sflag [#allocation3], %s197
        %s199 = sand.u32 %s68, 1
        %s200 = smul.addr %s199, 24
        %s201 = scalar_lea.vmem [#allocation2], %s200
        // Predicated region
        $region33: #{tpu_custom_call.1} parent=31 // pred_check
          %p202 = pneg %p81
        $region34: #{tpu_custom_call.1} parent=31 // pred_check_branch
          %204 = sbr.rel (%p202) target = $region36
        $region35: #{tpu_custom_call.1} parent=31 // pred_region
          %205 = dma.done %s198, 384
        $region36: #{tpu_custom_call.1} parent=31 // pred_fallthru
          _
        %p206 = scmp.lt.s32.totalorder %s24, 5
        %s207 = scalar_select %p206, %s24, 5
        %s208 = smul.addr %s207, 4
        %s209 = scalar_lea.vmem %s0, %s208
        %p210 = pneg %p53
        %p211 = pneg %p50
        %s212 = sand.u32 %s68, 1
        %s213 = scalar_lea.sflag [#allocation3], %s212
        %s214 = sand.u32 %s68, 1
        %s215 = smul.addr %s214, 24
        %s216 = scalar_lea.vmem [#allocation2], %s215
        %p217 = pneg %p81
        %p218 = pneg %p78
        %p219 = scmp.lt.s32.totalorder %s24, 5
        %s220 = scalar_select %p219, %s24, 5
        %s221 = smul.addr %s220, 8
        %s222 = scalar_lea.vmem %s2, %s221
        %p223 = pneg %p107
        %p224 = pneg %p104
        %p225 = pneg %p135
        %p226 = pneg %p132
        %s227 = sand.u32 %s122, 1
        %s228 = scalar_lea.sflag [#allocation4], %s227
        %s229 = sand.u32 %s122, 1
        %s230 = smul.addr %s229, 8
        %s231 = scalar_lea.vmem [#allocation5], %s230
        %p232 = scmp.lt.s32.totalorder %s24, 5
        %s233 = scalar_select %p232, %s24, 5
        %s234 = smul.addr %s233, 4
        %s235 = scalar_lea.vmem %s0, %s234
        %p236 = scmp.lt.s32.totalorder %s24, 5
        %s237 = scalar_select %p236, %s24, 5
        %s238 = smul.addr %s237, 8
        %s239 = scalar_lea.vmem %s2, %s238
        %v241 = vld [vmem:[%s235] sm:$0xf]
        %v242 = vld [vmem:[%s201] sm:$0xf]
        %v243 = vld [vmem:[%s201 + $0x4] sm:$0xf]
        %v244 = vld [vmem:[%s201 + $0x8] sm:$0xf]
        %v245 = vld [vmem:[%s201 + $0xc] sm:$0xf]
        %v246 = vld [vmem:[%s201 + $0x10] sm:$0xf]
        %v247 = vld [vmem:[%s201 + $0x14] sm:$0xf]
        %v248 = vld [vmem:[%s239] sm:$0xff]
        %250 = vset.pattern.permute.xlu0 0
        %251 = vperm.xlu0 %250, %v248
        %v252 = vpop.permute.xlu0 %251
        %v260 = vunpack.c.l.b16 %v242
        %v261 = vunpack.c.l.b16 %v243
        %v262 = vunpack.c.l.b16 %v244
        %v263 = vunpack.c.l.b16 %v245
        %v264 = vunpack.c.l.b16 %v246
        %v265 = vunpack.c.l.b16 %v247
        %v266 = vpack.c.b16 %v261, %v260
        %v267 = vpack.c.b16 %v263, %v262
        %v268 = vpack.c.b16 %v265, %v264
        %vm272 = vcmask 392192
        %v274 = vsel %vm272, %v241, 0
        %276 = vmatprep.subr.bf16.mxu0 0
        %277 = vmatpush1.bf16.msra.mxu0 %v266
        %278 = vmatprep.subr.bf16.mxu0 0
        %279 = vmatpush1.bf16.msra.mxu0 %v267
        %280 = vmatprep.subr.bf16.mxu0 0
        %281 = vmatpush1.bf16.msra.mxu0 %v268
        %282 = vmatprep.subr.bf16.mxu0 0
        %283 = vmatpush1.bf16.msra.mxu0 0
        %284 = vmatprep.subr.bf16.mxu0 0
        %285 = vmatpush1.bf16.msra.mxu0 0
        %286 = vmatprep.subr.bf16.mxu0 0
        %287 = vmatpush1.bf16.msra.mxu0 0
        %288 = vmatprep.subr.bf16.mxu0 0
        %289 = vmatpush1.bf16.msra.mxu0 0
        %290 = vmatprep.subr.bf16.mxu0 0
        %291 = vmatpush1.bf16.msra.mxu0 0
        %292 = vmatprep.subr.bf16.mxu0 0
        %293 = vmatpush1.bf16.msra.mxu0 0
        %294 = vmatprep.subr.bf16.mxu0 0
        %295 = vmatpush1.bf16.msra.mxu0 0
        %296 = vmatprep.subr.bf16.mxu0 0
        %297 = vmatpush1.bf16.msra.mxu0 0
        %298 = vmatprep.subr.bf16.mxu0 0
        %299 = vmatpush1.bf16.msra.mxu0 0
        %300 = vmatprep.subr.bf16.mxu0 0
        %301 = vmatpush1.bf16.msra.mxu0 0
        %302 = vmatprep.subr.bf16.mxu0 0
        %303 = vmatpush1.bf16.msra.mxu0 0
        %304 = vmatprep.subr.bf16.mxu0 0
        %305 = vmatpush1.bf16.msra.mxu0 0
        %306 = vmatprep.subr.bf16.mxu0 0
        %307 = vmatpush1.bf16.msra.mxu0 0
        %308 = vmatprep.mubr.bf16.mxu0 0
        %309 = vmatmul.mubr.bf16.gmra.mrb[0].mxu0 %v274
        %v310 = vpop.f32.mrb[0].mxu0
        %v311 = vadd.f32 %v252, %v310
        %v312 = vpop.f32.mrb[0].mxu0
        %v313 = vpop.f32.mrb[0].mxu0
        %v314 = vpop.f32.mrb[0].mxu0
        %315 = vdwg.mxu0
        %316 = vst [vmem:[%s231] sm:$0xff] %v311
        %s317 = sand.u32 %s122, 1
        %s318 = scalar_lea.sflag [#allocation4], %s317
        %s319 = sand.u32 %s122, 1
        %s320 = smul.addr %s319, 8
        %s321 = scalar_lea.vmem [#allocation5], %s320
        // Predicated region
        $region37: #{tpu_custom_call.1} parent=31 // pred_check
          %p322 = pneg %p132
        $region38: #{tpu_custom_call.1} parent=31 // pred_check_branch
          %324 = sbr.rel (%p322) target = $region40
        $region39: #{tpu_custom_call.1} parent=31 // pred_region
          %s326 = ssub.s32 128, 128
          %327 = vsyncadd %s318, %s326
          %s328 = sadd.s32 %s25, %s24
          %s329 = smul.addr %s328, 128
          %s330 = scalar_lea.hbm %s3, %s329
          %s332 = sshll.u32 %s321, 4
          %s333 = int_to_ptr.vmem [resolvable:$true] %s332
          %335 = dma.vmem_to_hbm [thread:$0]  %s333, 128, %s330, %s318
        $region40: #{tpu_custom_call.1} parent=31 // pred_fallthru
          _
      $region32: #{tpu_custom_call.1} parent=5 // pred_fallthru
        _
      %p336 = scmp.le.s32.totalorder 2, %s15
      // Predicated region
      $region41: #{tpu_custom_call.1} parent=5 // pred_check
        %p337 = pneg %p336
      $region42: #{tpu_custom_call.1} parent=5 // pred_check_branch
        %339 = sbr.rel (%p337) target = $region44
      $region43: #{tpu_custom_call.1} parent=5 // pred_region
        %s340 = ssub.s32 %s15, 2
        // Predicated region
        $region45: #{tpu_custom_call.1} parent=43 // pred_check
          %p341 = pneg %p138
        $region46: #{tpu_custom_call.1} parent=43 // pred_check_branch
          %343 = sbr.rel (%p341) target = $region48
        $region47: #{tpu_custom_call.1} parent=43 // pred_region
          %s344 = sand.u32 %s123, 1
          %s345 = scalar_lea.sflag [#allocation4], %s344
          %s346 = sand.u32 %s123, 1
          %s347 = smul.addr %s346, 8
          %s348 = scalar_lea.vmem [#allocation5], %s347
          %349 = dma.done %s345, 128
        $region48: #{tpu_custom_call.1} parent=43 // pred_fallthru
          _
      $region44: #{tpu_custom_call.1} parent=5 // pred_fallthru
        _
    $region6: #{tpu_custom_call.1} parent=1 // loop_footer
      %s19 = sadd.s32 1, %s15
    $region7: #{tpu_custom_call.1} parent=1 // loop_footer_branch
      %14 = sbr.rel target = $region3
    $region8: #{tpu_custom_call.1} parent=1 // loop_exit
      _
    %350 = vsyncpa [#allocation3], 1
    %s351 = scalar_lea.sflag [#allocation3], 1
    %352 = vsyncpa %s351, 1
    %353 = vsyncpa [#allocation4], 1
    %s354 = scalar_lea.sflag [#allocation4], 1
    %355 = vsyncpa %s354, 1

</llo_original>
